<compile_context>
chip_gen: v7x
topology: tpu7x:2x2x1
jax: 0.10.0
libtpu: 0.0.40
codegen_flags: <defaults>
</compile_context>

<pallas_src>
import math

import jax
import jax.numpy as jnp
from jax import lax
from jax.experimental import pallas as pl
from jax.experimental.pallas import tpu as pltpu


_VMEM_LIMIT = 48 * 1024 * 1024  # > 16/32 MiB scoped defaults, < 64 MiB v7x physical.


def _round_up(x, m):
    return ((x + m - 1) // m) * m


def _cdiv(a, b):
    return -(-a // b)


# ---------------------------------------------------------------------------
# Small/medium path: whole problem in VMEM, single fused kernel, one grid step.
# Runs fully in f32 (support never downcast) -- matmul_dtype is ignored here.
# ---------------------------------------------------------------------------
def _small_kernel(adj_ref, x_ref, w_ref, o_ref):
    support = jnp.dot(x_ref[...], w_ref[...], preferred_element_type=jnp.float32)
    o_ref[...] = jnp.dot(adj_ref[...], support,
                         preferred_element_type=jnp.float32).astype(o_ref.dtype)


def _small_kernel_bias(adj_ref, x_ref, w_ref, b_ref, o_ref):
    support = jnp.dot(x_ref[...], w_ref[...], preferred_element_type=jnp.float32)
    out = jnp.dot(adj_ref[...], support, preferred_element_type=jnp.float32)
    o_ref[...] = (out + b_ref[...]).astype(o_ref.dtype)


def _gcn_small(adj, x, weights, bias):
    N, F_in = x.shape
    F_out = weights.shape[1]

    adj_spec = pl.BlockSpec((N, N), lambda i: (0, 0))
    x_spec = pl.BlockSpec((N, F_in), lambda i: (0, 0))
    w_spec = pl.BlockSpec((F_in, F_out), lambda i: (0, 0))

    if bias is None:
        kernel = _small_kernel
        in_specs = [adj_spec, x_spec, w_spec]
        args = (adj, x, weights)
    else:
        kernel = _small_kernel_bias
        b2d = bias.astype(jnp.float32).reshape(1, F_out)
        in_specs = [adj_spec, x_spec, w_spec,
                    pl.BlockSpec((1, F_out), lambda i: (0, 0))]
        args = (adj, x, weights, b2d)

    return pl.pallas_call(
        kernel,
        out_shape=jax.ShapeDtypeStruct((N, F_out), jnp.float32),
        grid_spec=pltpu.PrefetchScalarGridSpec(
            num_scalar_prefetch=0,
            grid=(1,),
            in_specs=in_specs,
            out_specs=pl.BlockSpec((N, F_out), lambda i: (0, 0)),
        ),
        compiler_params=pltpu.CompilerParams(
            dimension_semantics=("arbitrary",),
            vmem_limit_bytes=_VMEM_LIMIT),
    )(*args)


# ---------------------------------------------------------------------------
# Tiled path kernels.
# ---------------------------------------------------------------------------
def _project_kernel(x_ref, w_ref, o_ref):
    # One (tmp, F_in) row tile of x @ full W -> (tmp, f_pad) tile of support.
    o_ref[...] = jnp.dot(x_ref[...], w_ref[...],
                         preferred_element_type=jnp.float32).astype(o_ref.dtype)


def _make_aggregate_kernel(n_valid, tk, matmul_dtype, resident, with_bias):
    """out[i] = sum_k adj[i, k-tile] @ support[k-tile] (+ bias on last k step).

    adj is streamed unpadded/uncast from HBM; the ragged column tail (global col
    index >= n_valid) of boundary tiles contains undefined values, so it is
    masked to zero in-kernel before the cast + MXU dot.
    """
    has_col_tail = (n_valid % tk) != 0

    def kernel(*refs):
        if with_bias:
            adj_ref, s_ref, b_ref, o_ref = refs
        else:
            adj_ref, s_ref, o_ref = refs
        k = pl.program_id(1)

        @pl.when(k == 0)
        def _():
            o_ref[...] = jnp.zeros_like(o_ref)

        adj_tile = adj_ref[...]
        if has_col_tail:
            # Only the last k tile actually has invalid columns; for earlier
            # tiles the comparison is all-true (cheap VPU work, hidden by DMA).
            col = lax.broadcasted_iota(jnp.int32, adj_tile.shape, 1)
            adj_tile = jnp.where(col < (n_valid - k * tk), adj_tile, 0)
        adj_tile = adj_tile.astype(matmul_dtype)

        if resident:
            # support fully resident in VMEM: slice the current k chunk.
            off = pl.multiple_of(k * tk, tk)
            s_tile = s_ref[pl.ds(off, tk), :]
        else:
            s_tile = s_ref[...]

        # Output block is resident across the 'arbitrary' k axis -> accumulate
        # directly into it (no separate f32 scratch accumulator).
        o_ref[...] += jnp.dot(adj_tile, s_tile, preferred_element_type=jnp.float32)

        if with_bias:
            @pl.when(k == pl.num_programs(1) - 1)
            def _():
                o_ref[...] += b_ref[...]

    return kernel


def _pick_tm(n, tm):
    # Prefer an even number of row tiles so the 'parallel' row axis keeps both
    # v7x TensorCores busy; fall back to the requested tm otherwise.
    for cand in (tm, tm - 128, tm - 256, 256):
        if cand >= 256 and cand % 128 == 0 and _cdiv(n, cand) % 2 == 0:
            return cand
    return tm


def _gcn_tiled(adj, x, weights, bias, matmul_dtype, tm, tk, resident_support_bytes):
    N, F_in = x.shape
    F_out = weights.shape[1]

    f_pad = _round_up(F_out, 128)      # lane-dense output stores (no masked vst)
    n_k_pad = _round_up(N, tk)         # contraction extent seen by the kernels
    tm = _pick_tm(N, tm)
    n_row_tiles = _cdiv(N, tm)
    n_row_pad = n_row_tiles * tm       # out is allocated padded; sliced at the end

    # ---- projection: support = x @ W, computed exactly once ------------------
    # Only the small operands are zero-padded (x rows / W cols); adj is untouched,
    # so the dominant (N,N) stream is read from HBM exactly once, by the kernel.
    x_p = jnp.pad(x, ((0, n_k_pad - N), (0, 0)))
    w_p = jnp.pad(weights, ((0, 0), (0, f_pad - F_out)))
    tmp = math.gcd(tk, 512)
    support = pl.pallas_call(
        _project_kernel,
        out_shape=jax.ShapeDtypeStruct((n_k_pad, f_pad), matmul_dtype),
        grid_spec=pltpu.PrefetchScalarGridSpec(
            num_scalar_prefetch=0,
            grid=(n_k_pad // tmp,),
            in_specs=[
                pl.BlockSpec((tmp, F_in), lambda i: (i, 0)),
                pl.BlockSpec((F_in, f_pad), lambda i: (0, 0)),
            ],
            out_specs=pl.BlockSpec((tmp, f_pad), lambda i: (i, 0)),
        ),
        compiler_params=pltpu.CompilerParams(
            dimension_semantics=("parallel",),
            vmem_limit_bytes=_VMEM_LIMIT),
    )(x_p, w_p)

    # ---- aggregation: out = adj @ support (+ bias) ----------------------------
    support_bytes = n_k_pad * f_pad * jnp.dtype(matmul_dtype).itemsize
    resident = support_bytes <= resident_support_bytes

    adj_spec = pl.BlockSpec((tm, tk), lambda i, k: (i, k))
    if resident:
        # Constant index map -> support DMA'd into VMEM once and reused for every
        # row tile / k step (no per-row-tile re-streaming from HBM).
        sup_spec = pl.BlockSpec((n_k_pad, f_pad), lambda i, k: (0, 0))
    else:
        sup_spec = pl.BlockSpec((tk, f_pad), lambda i, k: (k, 0))
    out_spec = pl.BlockSpec((tm, f_pad), lambda i, k: (i, 0))

    with_bias = bias is not None
    kernel = _make_aggregate_kernel(N, tk, matmul_dtype, resident, with_bias)
    if with_bias:
        b_p = jnp.pad(bias.astype(jnp.float32).reshape(1, F_out),
                      ((0, 0), (0, f_pad - F_out)))
        in_specs = [adj_spec, sup_spec,
                    pl.BlockSpec((1, f_pad), lambda i, k: (0, 0))]
        args = (adj, support, b_p)
    else:
        in_specs = [adj_spec, sup_spec]
        args = (adj, support)

    out_p = pl.pallas_call(
        kernel,
        out_shape=jax.ShapeDtypeStruct((n_row_pad, f_pad), jnp.float32),
        grid_spec=pltpu.PrefetchScalarGridSpec(
            num_scalar_prefetch=0,
            grid=(n_row_tiles, n_k_pad // tk),
            in_specs=in_specs,
            out_specs=out_spec,
        ),
        compiler_params=pltpu.CompilerParams(
            dimension_semantics=("parallel", "arbitrary"),
            vmem_limit_bytes=_VMEM_LIMIT),
    )(*args)

    return out_p[:N, :F_out]


# ---------------------------------------------------------------------------
# Public wrapper (mirrors GCNLayer.forward(adj, x)).
# ---------------------------------------------------------------------------
def gcn_layer(adj, x, weights, bias=None, *,
              matmul_dtype=jnp.bfloat16, tm=512, tk=1024,
              small_threshold=1024,
              resident_support_bytes=12 * 1024 * 1024):
    """Pallas TPU implementation of GCNLayer.forward(adj, x).

    matmul_dtype only affects the large (tiled) path; pass jnp.float32 there as
    the accuracy escape hatch. The fused path for N <= small_threshold runs
    fully in f32.
    """
    N, F_in = x.shape
    assert adj.shape == (N, N), "adj must be (N, N) dense (spmm handled densified)"
    assert weights.shape[0] == F_in

    if N <= small_threshold:
        return _gcn_small(adj, x, weights, bias)
    return _gcn_tiled(adj, x, weights, bias, matmul_dtype, tm, tk,
                      resident_support_bytes)


def gcn_layer_ref(adj, x, weights, bias=None):
    out = adj @ (x @ weights)
    if bias is not None:
        out = out + bias
    return out


if __name__ == "__main__":
    key = jax.random.PRNGKey(0)
    k_adj, k_x, k_w, k_adj2, k_x2, k_b = jax.random.split(key, 6)

    F_in, F_out = 64, 32
    std = 1.0 / math.sqrt(F_out)  # reset_parameters(): uniform(-std, std)
    weights = jax.random.uniform(k_w, (F_in, F_out), minval=-std, maxval=std,
                                 dtype=jnp.float32)
    bias = jax.random.uniform(k_b, (F_out,), minval=-std, maxval=std,
                              dtype=jnp.float32)

    def make_graph(ka, kx, n, p):
        x = jax.random.normal(kx, (n, F_in), dtype=jnp.float32)
        a = (jax.random.uniform(ka, (n, n)) < p).astype(jnp.float32)
        adj = a + a.T + jnp.eye(n, dtype=jnp.float32)
        adj = adj / jnp.maximum(adj.sum(axis=1, keepdims=True), 1.0)
        return adj, x

    # 1) Small fused path (single call, pure f32), bias=False (module default).
    adj, x = make_graph(k_adj, k_x, 128, 0.1)
    ref = gcn_layer_ref(adj, x, weights, None)
    out = jax.block_until_ready(gcn_layer(adj, x, weights, None))
    assert out.shape == (128, F_out)
    assert jnp.allclose(out, ref, atol=1e-4, rtol=1e-4), "small-path mismatch"

    # 1b) Small fused path with bias.
    out_b = jax.block_until_ready(gcn_layer(adj, x, weights, bias))
    ref_b = gcn_layer_ref(adj, x, weights, bias)
    assert jnp.allclose(out_b, ref_b, atol=1e-4, rtol=1e-4), "small-path bias mismatch"

    # 2) Tiled path: ragged N (exercises in-kernel tail masking, boundary row
    #    blocks, resident support, bf16 MXU, bias).
    adj2, x2 = make_graph(k_adj2, k_x2, 1500, 0.05)
    ref2 = gcn_layer_ref(adj2, x2, weights, bias)
    out2 = jax.block_until_ready(gcn_layer(adj2, x2, weights, bias))
    assert out2.shape == (1500, F_out)
    assert jnp.allclose(out2, ref2, atol=3e-2, rtol=3e-2), "tiled (resident) mismatch"

    # 2b) Tiled path: streaming-support fallback + f32 MXU escape hatch.
    out3 = jax.block_until_ready(
        gcn_layer(adj2, x2, weights, bias,
                  matmul_dtype=jnp.float32, resident_support_bytes=0))
    assert jnp.allclose(out3, ref2, atol=1e-3, rtol=1e-3), "tiled (streaming) mismatch"

    print("KERNEL_OK")
</pallas_src>

<mosaic_0001>
module attributes {stable_mosaic.version = 11 : i64} {
  func.func @_small_kernel(%arg0: i32, %arg1: memref<128x128xf32, #tpu.memory_space<vmem>>, %arg2: memref<128x64xf32, #tpu.memory_space<vmem>>, %arg3: memref<64x32xf32, #tpu.memory_space<vmem>>, %arg4: memref<128x32xf32, #tpu.memory_space<vmem>>) attributes {dimension_semantics = [#tpu.dimension_semantics<arbitrary>], iteration_bounds = array<i64: 1>, scalar_prefetch = 0 : i64, scratch_operands = 0 : i64, tpu.core_type = #tpu.core_type<tc>, window_params = [{pipeline_mode = #tpu.pipeline_mode<synchronous>, transform_indices = @transform_0, window_bounds = array<i64: 128, 128>}, {pipeline_mode = #tpu.pipeline_mode<synchronous>, transform_indices = @transform_1, window_bounds = array<i64: 128, 64>}, {pipeline_mode = #tpu.pipeline_mode<synchronous>, transform_indices = @transform_2, window_bounds = array<i64: 64, 32>}, {pipeline_mode = #tpu.pipeline_mode<synchronous>, transform_indices = @transform_3, window_bounds = array<i64: 128, 32>}]} {
    %c0 = arith.constant 0 : index
    %c0_0 = arith.constant 0 : index
    %0 = vector.load %arg2[%c0, %c0_0] : memref<128x64xf32, #tpu.memory_space<vmem>>, vector<128x64xf32>
    %c0_1 = arith.constant 0 : index
    %c0_2 = arith.constant 0 : index
    %1 = vector.load %arg3[%c0_1, %c0_2] : memref<64x32xf32, #tpu.memory_space<vmem>>, vector<64x32xf32>
    %cst = arith.constant dense<0.000000e+00> : vector<128x32xf32>
    %2 = tpu.matmul %0, %1, %cst {dimension_numbers = #tpu.dot_dimension_numbers<[1], [0], [0], [1], [0, 0, 1, 1], [], []>} : vector<128x64xf32>, vector<64x32xf32>, vector<128x32xf32> -> vector<128x32xf32>
    %c0_3 = arith.constant 0 : index
    %c0_4 = arith.constant 0 : index
    %3 = vector.load %arg1[%c0_3, %c0_4] : memref<128x128xf32, #tpu.memory_space<vmem>>, vector<128x128xf32>
    %cst_5 = arith.constant dense<0.000000e+00> : vector<128x32xf32>
    %4 = tpu.matmul %3, %2, %cst_5 {dimension_numbers = #tpu.dot_dimension_numbers<[1], [0], [0], [1], [0, 0, 1, 1], [], []>} : vector<128x128xf32>, vector<128x32xf32>, vector<128x32xf32> -> vector<128x32xf32>
    %c0_6 = arith.constant 0 : index
    %c0_7 = arith.constant 0 : index
    %5 = vector.load %arg4[%c0_6, %c0_7] : memref<128x32xf32, #tpu.memory_space<vmem>>, vector<128x32xf32>
    tpu.vector_store %arg4[%c0_6, %c0_7], %4 {strides = array<i32>} : memref<128x32xf32, #tpu.memory_space<vmem>>, vector<128x32xf32>,
    return
  }
  func.func @transform_0(%arg0: i32) -> (i32, i32) {
    %c0_i32 = arith.constant 0 : i32
    %c0_i32_0 = arith.constant 0 : i32
    %c0_i32_1 = arith.constant 0 : i32
    return %c0_i32, %c0_i32_0 : i32, i32
  }
  func.func @transform_1(%arg0: i32) -> (i32, i32) {
    %c0_i32 = arith.constant 0 : i32
    %c0_i32_0 = arith.constant 0 : i32
    %c0_i32_1 = arith.constant 0 : i32
    return %c0_i32, %c0_i32_0 : i32, i32
  }
  func.func @transform_2(%arg0: i32) -> (i32, i32) {
    %c0_i32 = arith.constant 0 : i32
    %c0_i32_0 = arith.constant 0 : i32
    %c0_i32_1 = arith.constant 0 : i32
    return %c0_i32, %c0_i32_0 : i32, i32
  }
  func.func @transform_3(%arg0: i32) -> (i32, i32) {
    %c0_i32 = arith.constant 0 : i32
    %c0_i32_0 = arith.constant 0 : i32
    %c0_i32_1 = arith.constant 0 : i32
    return %c0_i32, %c0_i32_0 : i32, i32
  }
}

</mosaic_0001>

<llo_original>
// kernel: tpu_custom_call.1
$region0: #{tpu_custom_call.1}
  #allocation0 [shape = 'u32[]', space=smem, size = 0x4, offset = 0x4, fixed_abs, tag = 'smem constant byte address 0x4 - core index']
  #allocation1 [shape = 'u32[144,128]{1,0:T(1,128)}', space=vmem, size = 0x12000, scoped, tag = 'internal scratch']
  %s0 = inlined_call_operand.vmem [shape: f32[128,128], index: 0, kind: input, shape index: {}]
  %s1 = inlined_call_operand.vmem [shape: f32[128,64], index: 1, kind: input, shape index: {}]
  %s2 = inlined_call_operand.vmem [shape: f32[64,32], index: 2, kind: input, shape index: {}]
  %s3 = inlined_call_operand.vmem [shape: f32[128,32], index: 3, kind: output, shape index: {}]
  %s4 = sld [smem:[#allocation0]]
  $region22: #{tpu_custom_call.1} parent=0
    _
  %s6 = ssub.s32 1, %s4
  %s7 = scalar_select 0, %s6, %s4
  // Predicated region
  $region2: #{tpu_custom_call.1} parent=0 // pred_check
    _
  $region3: #{tpu_custom_call.1} parent=0 // pred_check_branch
    %9 = sbr.rel (0) target = $region5
  $region4: #{tpu_custom_call.1} parent=0 // pred_region
    _
  $region5: #{tpu_custom_call.1} parent=0 // pred_fallthru
    _
  // Predicated region
  $region6: #{tpu_custom_call.1} parent=0 // pred_check
    _
  $region7: #{tpu_custom_call.1} parent=0 // pred_check_branch
    %11 = sbr.rel (0) target = $region9
  $region8: #{tpu_custom_call.1} parent=0 // pred_region
    _
  $region9: #{tpu_custom_call.1} parent=0 // pred_fallthru
    _
  // Predicated region
  $region10: #{tpu_custom_call.1} parent=0 // pred_check
    _
  $region11: #{tpu_custom_call.1} parent=0 // pred_check_branch
    %13 = sbr.rel (0) target = $region13
  $region12: #{tpu_custom_call.1} parent=0 // pred_region
    _
  $region13: #{tpu_custom_call.1} parent=0 // pred_fallthru
    _
  %v14 = vld [vmem:[%s1] sm:$0xff]
  %v15 = vld [vmem:[%s1 + $0x8] sm:$0xff]
  %v16 = vld [vmem:[%s1 + $0x10] sm:$0xff]
  %v17 = vld [vmem:[%s1 + $0x18] sm:$0xff]
  %v18 = vld [vmem:[%s1 + $0x20] sm:$0xff]
  %v19 = vld [vmem:[%s1 + $0x28] sm:$0xff]
  %v20 = vld [vmem:[%s1 + $0x30] sm:$0xff]
  %v21 = vld [vmem:[%s1 + $0x38] sm:$0xff]
  %v22 = vld [vmem:[%s1 + $0x40] sm:$0xff]
  %v23 = vld [vmem:[%s1 + $0x48] sm:$0xff]
  %v24 = vld [vmem:[%s1 + $0x50] sm:$0xff]
  %v25 = vld [vmem:[%s1 + $0x58] sm:$0xff]
  %v26 = vld [vmem:[%s1 + $0x60] sm:$0xff]
  %v27 = vld [vmem:[%s1 + $0x68] sm:$0xff]
  %v28 = vld [vmem:[%s1 + $0x70] sm:$0xff]
  %v29 = vld [vmem:[%s1 + $0x78] sm:$0xff]
  %v30 = vld [vmem:[%s2] sm:$0xff]
  %v31 = vld [vmem:[%s2 + $0x8] sm:$0xff]
  %v32 = vld [vmem:[%s2 + $0x10] sm:$0xff]
  %v33 = vld [vmem:[%s2 + $0x18] sm:$0xff]
  %v34 = vld [vmem:[%s2 + $0x20] sm:$0xff]
  %v35 = vld [vmem:[%s2 + $0x28] sm:$0xff]
  %v36 = vld [vmem:[%s2 + $0x30] sm:$0xff]
  %v37 = vld [vmem:[%s2 + $0x38] sm:$0xff]
  %vm38 = vcmask 523264
  %v40 = vsel %vm38, %v14, 0
  %v43 = vsel %vm38, %v15, 0
  %v46 = vsel %vm38, %v16, 0
  %v49 = vsel %vm38, %v17, 0
  %v52 = vsel %vm38, %v18, 0
  %v55 = vsel %vm38, %v19, 0
  %v58 = vsel %vm38, %v20, 0
  %v61 = vsel %vm38, %v21, 0
  %v64 = vsel %vm38, %v22, 0
  %v67 = vsel %vm38, %v23, 0
  %v70 = vsel %vm38, %v24, 0
  %v73 = vsel %vm38, %v25, 0
  %v76 = vsel %vm38, %v26, 0
  %v79 = vsel %vm38, %v27, 0
  %v82 = vsel %vm38, %v28, 0
  %v85 = vsel %vm38, %v29, 0
  %87 = vmatprep.subr.mxu0 0.0
  %88 = vmatpush1.msra.mxu0 %v30
  %89 = vmatprep.subr.mxu0 0.0
  %90 = vmatpush1.msra.mxu0 %v31
  %91 = vmatprep.subr.mxu0 0.0
  %92 = vmatpush1.msra.mxu0 %v32
  %93 = vmatprep.subr.mxu0 0.0
  %94 = vmatpush1.msra.mxu0 %v33
  %95 = vmatprep.subr.mxu0 0.0
  %96 = vmatpush1.msra.mxu0 %v34
  %97 = vmatprep.subr.mxu0 0.0
  %98 = vmatpush1.msra.mxu0 %v35
  %99 = vmatprep.subr.mxu0 0.0
  %100 = vmatpush1.msra.mxu0 %v36
  %101 = vmatprep.subr.mxu0 0.0
  %102 = vmatpush1.msra.mxu0 %v37
  %103 = vmatprep.subr.mxu0 0.0
  %104 = vmatpush1.msra.mxu0 0.0
  %105 = vmatprep.subr.mxu0 0.0
  %106 = vmatpush1.msra.mxu0 0.0
  %107 = vmatprep.subr.mxu0 0.0
  %108 = vmatpush1.msra.mxu0 0.0
  %109 = vmatprep.subr.mxu0 0.0
  %110 = vmatpush1.msra.mxu0 0.0
  %111 = vmatprep.subr.mxu0 0.0
  %112 = vmatpush1.msra.mxu0 0.0
  %113 = vmatprep.subr.mxu0 0.0
  %114 = vmatpush1.msra.mxu0 0.0
  %115 = vmatprep.subr.mxu0 0.0
  %116 = vmatpush1.msra.mxu0 0.0
  %117 = vmatprep.subr.mxu0 0.0
  %118 = vmatpush1.msra.mxu0 0.0
  %119 = vmatprep.subr.mxu0 0.0
  %120 = vmatpush1.msra.mxu0 0.0
  %121 = vmatprep.subr.mxu0 0.0
  %122 = vmatpush1.msra.mxu0 0.0
  %123 = vmatprep.subr.mxu0 0.0
  %124 = vmatpush1.msra.mxu0 0.0
  %125 = vmatprep.subr.mxu0 0.0
  %126 = vmatpush1.msra.mxu0 0.0
  %127 = vmatprep.subr.mxu0 0.0
  %128 = vmatpush1.msra.mxu0 0.0
  %129 = vmatprep.subr.mxu0 0.0
  %130 = vmatpush1.msra.mxu0 0.0
  %131 = vmatprep.subr.mxu0 0.0
  %132 = vmatpush1.msra.mxu0 0.0
  %133 = vmatprep.subr.mxu0 0.0
  %134 = vmatpush1.msra.mxu0 0.0
  %135 = vmatprep.subr.mxu0 0.0
  %136 = vmatpush1.msra.mxu0 0.0
  %137 = vmatprep.subr.mxu0 0.0
  %138 = vmatpush1.msra.mxu0 0.0
  %139 = vmatprep.subr.mxu0 0.0
  %140 = vmatpush1.msra.mxu0 0.0
  %141 = vmatprep.subr.mxu0 0.0
  %142 = vmatpush1.msra.mxu0 0.0
  %143 = vmatprep.subr.mxu0 0.0
  %144 = vmatpush1.msra.mxu0 0.0
  %145 = vmatprep.subr.mxu0 0.0
  %146 = vmatpush1.msra.mxu0 0.0
  %147 = vmatprep.subr.mxu0 0.0
  %148 = vmatpush1.msra.mxu0 0.0
  %149 = vmatprep.subr.mxu0 0.0
  %150 = vmatpush1.msra.mxu0 0.0
  %151 = vmatprep.mubr.f32.mxu0 0.0
  %152 = vmatmul.mubr.f32.gmra.mrb[0].mxu0 %v40
  %v153 = vpop.f32.mrb[0].mxu0
  %v154 = vadd.f32 0.0, %v153
  %v155 = vpop.f32.mrb[0].mxu0
  %156 = vmatprep.mubr.f32.mxu0 0.0
  %157 = vmatmul.mubr.f32.gmra.mrb[0].mxu0 %v43
  %v158 = vpop.f32.mrb[0].mxu0
  %v159 = vadd.f32 0.0, %v158
  %v160 = vpop.f32.mrb[0].mxu0
  %161 = vmatprep.mubr.f32.mxu0 0.0
  %162 = vmatmul.mubr.f32.gmra.mrb[0].mxu0 %v46
  %v163 = vpop.f32.mrb[0].mxu0
  %v164 = vadd.f32 0.0, %v163
  %v165 = vpop.f32.mrb[0].mxu0
  %166 = vmatprep.mubr.f32.mxu0 0.0
  %167 = vmatmul.mubr.f32.gmra.mrb[0].mxu0 %v49
  %v168 = vpop.f32.mrb[0].mxu0
  %v169 = vadd.f32 0.0, %v168
  %v170 = vpop.f32.mrb[0].mxu0
  %171 = vmatprep.mubr.f32.mxu0 0.0
  %172 = vmatmul.mubr.f32.gmra.mrb[0].mxu0 %v52
  %v173 = vpop.f32.mrb[0].mxu0
  %v174 = vadd.f32 0.0, %v173
  %v175 = vpop.f32.mrb[0].mxu0
  %176 = vmatprep.mubr.f32.mxu0 0.0
  %177 = vmatmul.mubr.f32.gmra.mrb[0].mxu0 %v55
  %v178 = vpop.f32.mrb[0].mxu0
  %v179 = vadd.f32 0.0, %v178
  %v180 = vpop.f32.mrb[0].mxu0
  %181 = vmatprep.mubr.f32.mxu0 0.0
  %182 = vmatmul.mubr.f32.gmra.mrb[0].mxu0 %v58
  %v183 = vpop.f32.mrb[0].mxu0
  %v184 = vadd.f32 0.0, %v183
  %v185 = vpop.f32.mrb[0].mxu0
  %186 = vmatprep.mubr.f32.mxu0 0.0
  %187 = vmatmul.mubr.f32.gmra.mrb[0].mxu0 %v61
  %v188 = vpop.f32.mrb[0].mxu0
  %v189 = vadd.f32 0.0, %v188
  %v190 = vpop.f32.mrb[0].mxu0
  %191 = vmatprep.mubr.f32.mxu0 0.0
  %192 = vmatmul.mubr.f32.gmra.mrb[0].mxu0 %v64
  %v193 = vpop.f32.mrb[0].mxu0
  %v194 = vadd.f32 0.0, %v193
  %v195 = vpop.f32.mrb[0].mxu0
  %196 = vmatprep.mubr.f32.mxu0 0.0
  %197 = vmatmul.mubr.f32.gmra.mrb[0].mxu0 %v67
  %v198 = vpop.f32.mrb[0].mxu0
  %v199 = vadd.f32 0.0, %v198
  %v200 = vpop.f32.mrb[0].mxu0
  %201 = vmatprep.mubr.f32.mxu0 0.0
  %202 = vmatmul.mubr.f32.gmra.mrb[0].mxu0 %v70
  %v203 = vpop.f32.mrb[0].mxu0
  %v204 = vadd.f32 0.0, %v203
  %v205 = vpop.f32.mrb[0].mxu0
  %206 = vmatprep.mubr.f32.mxu0 0.0
  %207 = vmatmul.mubr.f32.gmra.mrb[0].mxu0 %v73
  %v208 = vpop.f32.mrb[0].mxu0
  %v209 = vadd.f32 0.0, %v208
  %v210 = vpop.f32.mrb[0].mxu0
  %211 = vmatprep.mubr.f32.mxu0 0.0
  %212 = vmatmul.mubr.f32.gmra.mrb[0].mxu0 %v76
  %v213 = vpop.f32.mrb[0].mxu0
  %v214 = vadd.f32 0.0, %v213
  %v215 = vpop.f32.mrb[0].mxu0
  %216 = vmatprep.mubr.f32.mxu0 0.0
  %217 = vmatmul.mubr.f32.gmra.mrb[0].mxu0 %v79
  %v218 = vpop.f32.mrb[0].mxu0
  %v219 = vadd.f32 0.0, %v218
  %v220 = vpop.f32.mrb[0].mxu0
  %221 = vmatprep.mubr.f32.mxu0 0.0
  %222 = vmatmul.mubr.f32.gmra.mrb[0].mxu0 %v82
  %v223 = vpop.f32.mrb[0].mxu0
  %v224 = vadd.f32 0.0, %v223
  %v225 = vpop.f32.mrb[0].mxu0
  %226 = vmatprep.mubr.f32.mxu0 0.0
  %227 = vmatmul.mubr.f32.gmra.mrb[0].mxu0 %v85
  %v228 = vpop.f32.mrb[0].mxu0
  %v229 = vadd.f32 0.0, %v228
  %v230 = vpop.f32.mrb[0].mxu0
  %231 = vdwg.mxu0
  %v232 = vld [vmem:[%s0] sm:$0xff]
  %v233 = vld [vmem:[%s0 + $0x8] sm:$0xff]
  %v234 = vld [vmem:[%s0 + $0x10] sm:$0xff]
  %v235 = vld [vmem:[%s0 + $0x18] sm:$0xff]
  %v236 = vld [vmem:[%s0 + $0x20] sm:$0xff]
  %v237 = vld [vmem:[%s0 + $0x28] sm:$0xff]
  %v238 = vld [vmem:[%s0 + $0x30] sm:$0xff]
  %v239 = vld [vmem:[%s0 + $0x38] sm:$0xff]
  %v240 = vld [vmem:[%s0 + $0x40] sm:$0xff]
  %v241 = vld [vmem:[%s0 + $0x48] sm:$0xff]
  %v242 = vld [vmem:[%s0 + $0x50] sm:$0xff]
  %v243 = vld [vmem:[%s0 + $0x58] sm:$0xff]
  %v244 = vld [vmem:[%s0 + $0x60] sm:$0xff]
  %v245 = vld [vmem:[%s0 + $0x68] sm:$0xff]
  %v246 = vld [vmem:[%s0 + $0x70] sm:$0xff]
  %v247 = vld [vmem:[%s0 + $0x78] sm:$0xff]
  %248 = vmatprep.subr.mxu0 0.0
  %249 = vmatpush1.msra.mxu0 %v154
  %250 = vmatprep.subr.mxu0 0.0
  %251 = vmatpush1.msra.mxu0 %v159
  %252 = vmatprep.subr.mxu0 0.0
  %253 = vmatpush1.msra.mxu0 %v164
  %254 = vmatprep.subr.mxu0 0.0
  %255 = vmatpush1.msra.mxu0 %v169
  %256 = vmatprep.subr.mxu0 0.0
  %257 = vmatpush1.msra.mxu0 %v174
  %258 = vmatprep.subr.mxu0 0.0
  %259 = vmatpush1.msra.mxu0 %v179
  %260 = vmatprep.subr.mxu0 0.0
  %261 = vmatpush1.msra.mxu0 %v184
  %262 = vmatprep.subr.mxu0 0.0
  %263 = vmatpush1.msra.mxu0 %v189
  %264 = vmatprep.subr.mxu0 0.0
  %265 = vmatpush1.msra.mxu0 %v194
  %266 = vmatprep.subr.mxu0 0.0
  %267 = vmatpush1.msra.mxu0 %v199
  %268 = vmatprep.subr.mxu0 0.0
  %269 = vmatpush1.msra.mxu0 %v204
  %270 = vmatprep.subr.mxu0 0.0
  %271 = vmatpush1.msra.mxu0 %v209
  %272 = vmatprep.subr.mxu0 0.0
  %273 = vmatpush1.msra.mxu0 %v214
  %274 = vmatprep.subr.mxu0 0.0
  %275 = vmatpush1.msra.mxu0 %v219
  %276 = vmatprep.subr.mxu0 0.0
  %277 = vmatpush1.msra.mxu0 %v224
  %278 = vmatprep.subr.mxu0 0.0
  %279 = vmatpush1.msra.mxu0 %v229
  %280 = vmatprep.subr.mxu0 0.0
  %281 = vmatpush1.msra.mxu0 0.0
  %282 = vmatprep.subr.mxu0 0.0
  %283 = vmatpush1.msra.mxu0 0.0
  %284 = vmatprep.subr.mxu0 0.0
  %285 = vmatpush1.msra.mxu0 0.0
  %286 = vmatprep.subr.mxu0 0.0
  %287 = vmatpush1.msra.mxu0 0.0
  %288 = vmatprep.subr.mxu0 0.0
  %289 = vmatpush1.msra.mxu0 0.0
  %290 = vmatprep.subr.mxu0 0.0
  %291 = vmatpush1.msra.mxu0 0.0
  %292 = vmatprep.subr.mxu0 0.0
  %293 = vmatpush1.msra.mxu0 0.0
  %294 = vmatprep.subr.mxu0 0.0
  %295 = vmatpush1.msra.mxu0 0.0
  %296 = vmatprep.subr.mxu0 0.0
  %297 = vmatpush1.msra.mxu0 0.0
  %298 = vmatprep.subr.mxu0 0.0
  %299 = vmatpush1.msra.mxu0 0.0
  %300 = vmatprep.subr.mxu0 0.0
  %301 = vmatpush1.msra.mxu0 0.0
  %302 = vmatprep.subr.mxu0 0.0
  %303 = vmatpush1.msra.mxu0 0.0
  %304 = vmatprep.subr.mxu0 0.0
  %305 = vmatpush1.msra.mxu0 0.0
  %306 = vmatprep.subr.mxu0 0.0
  %307 = vmatpush1.msra.mxu0 0.0
  %308 = vmatprep.subr.mxu0 0.0
  %309 = vmatpush1.msra.mxu0 0.0
  %310 = vmatprep.subr.mxu0 0.0
  %311 = vmatpush1.msra.mxu0 0.0
  %312 = vmatprep.mubr.f32.mxu0 0.0
  %313 = vmatmul.mubr.f32.gmra.mrb[0].mxu0 %v232
  %v314 = vpop.f32.mrb[0].mxu0
  %v315 = vadd.f32 0.0, %v314
  %v316 = vpop.f32.mrb[0].mxu0
  %317 = vmatprep.mubr.f32.mxu0 0.0
  %318 = vmatmul.mubr.f32.gmra.mrb[0].mxu0 %v233
  %v319 = vpop.f32.mrb[0].mxu0
  %v320 = vadd.f32 0.0, %v319
  %v321 = vpop.f32.mrb[0].mxu0
  %322 = vmatprep.mubr.f32.mxu0 0.0
  %323 = vmatmul.mubr.f32.gmra.mrb[0].mxu0 %v234
  %v324 = vpop.f32.mrb[0].mxu0
  %v325 = vadd.f32 0.0, %v324
  %v326 = vpop.f32.mrb[0].mxu0
  %327 = vmatprep.mubr.f32.mxu0 0.0
  %328 = vmatmul.mubr.f32.gmra.mrb[0].mxu0 %v235
  %v329 = vpop.f32.mrb[0].mxu0
  %v330 = vadd.f32 0.0, %v329
  %v331 = vpop.f32.mrb[0].mxu0
  %332 = vmatprep.mubr.f32.mxu0 0.0
  %333 = vmatmul.mubr.f32.gmra.mrb[0].mxu0 %v236
  %v334 = vpop.f32.mrb[0].mxu0
  %v335 = vadd.f32 0.0, %v334
  %v336 = vpop.f32.mrb[0].mxu0
  %337 = vmatprep.mubr.f32.mxu0 0.0
  %338 = vmatmul.mubr.f32.gmra.mrb[0].mxu0 %v237
  %v339 = vpop.f32.mrb[0].mxu0
  %v340 = vadd.f32 0.0, %v339
  %v341 = vpop.f32.mrb[0].mxu0
  %342 = vmatprep.mubr.f32.mxu0 0.0
  %343 = vmatmul.mubr.f32.gmra.mrb[0].mxu0 %v238
  %v344 = vpop.f32.mrb[0].mxu0
  %v345 = vadd.f32 0.0, %v344
  %v346 = vpop.f32.mrb[0].mxu0
  %347 = vmatprep.mubr.f32.mxu0 0.0
  %348 = vmatmul.mubr.f32.gmra.mrb[0].mxu0 %v239
  %v349 = vpop.f32.mrb[0].mxu0
  %v350 = vadd.f32 0.0, %v349
  %v351 = vpop.f32.mrb[0].mxu0
  %352 = vmatprep.mubr.f32.mxu0 0.0
  %353 = vmatmul.mubr.f32.gmra.mrb[0].mxu0 %v240
  %v354 = vpop.f32.mrb[0].mxu0
  %v355 = vadd.f32 0.0, %v354
  %v356 = vpop.f32.mrb[0].mxu0
  %357 = vmatprep.mubr.f32.mxu0 0.0
  %358 = vmatmul.mubr.f32.gmra.mrb[0].mxu0 %v241
  %v359 = vpop.f32.mrb[0].mxu0
  %v360 = vadd.f32 0.0, %v359
  %v361 = vpop.f32.mrb[0].mxu0
  %362 = vmatprep.mubr.f32.mxu0 0.0
  %363 = vmatmul.mubr.f32.gmra.mrb[0].mxu0 %v242
  %v364 = vpop.f32.mrb[0].mxu0
  %v365 = vadd.f32 0.0, %v364
  %v366 = vpop.f32.mrb[0].mxu0
  %367 = vmatprep.mubr.f32.mxu0 0.0
  %368 = vmatmul.mubr.f32.gmra.mrb[0].mxu0 %v243
  %v369 = vpop.f32.mrb[0].mxu0
  %v370 = vadd.f32 0.0, %v369
  %v371 = vpop.f32.mrb[0].mxu0
  %372 = vmatprep.mubr.f32.mxu0 0.0
  %373 = vmatmul.mubr.f32.gmra.mrb[0].mxu0 %v244
  %v374 = vpop.f32.mrb[0].mxu0
  %v375 = vadd.f32 0.0, %v374
  %v376 = vpop.f32.mrb[0].mxu0
  %377 = vmatprep.mubr.f32.mxu0 0.0
  %378 = vmatmul.mubr.f32.gmra.mrb[0].mxu0 %v245
  %v379 = vpop.f32.mrb[0].mxu0
  %v380 = vadd.f32 0.0, %v379
  %v381 = vpop.f32.mrb[0].mxu0
  %382 = vmatprep.mubr.f32.mxu0 0.0
  %383 = vmatmul.mubr.f32.gmra.mrb[0].mxu0 %v246
  %v384 = vpop.f32.mrb[0].mxu0
  %v385 = vadd.f32 0.0, %v384
  %v386 = vpop.f32.mrb[0].mxu0
  %387 = vmatprep.mubr.f32.mxu0 0.0
  %388 = vmatmul.mubr.f32.gmra.mrb[0].mxu0 %v247
  %v389 = vpop.f32.mrb[0].mxu0
  %v390 = vadd.f32 0.0, %v389
  %v391 = vpop.f32.mrb[0].mxu0
  %392 = vdwg.mxu0
  %vm393 = vcmask 261120
  %394 = vst.msk [vmem:[%s3] sm:$0xff] %vm393, %v315
  %395 = vst.msk [vmem:[%s3 + $0x8] sm:$0xff] %vm393, %v320
  %396 = vst.msk [vmem:[%s3 + $0x10] sm:$0xff] %vm393, %v325
  %397 = vst.msk [vmem:[%s3 + $0x18] sm:$0xff] %vm393, %v330
  %398 = vst.msk [vmem:[%s3 + $0x20] sm:$0xff] %vm393, %v335
  %399 = vst.msk [vmem:[%s3 + $0x28] sm:$0xff] %vm393, %v340
  %400 = vst.msk [vmem:[%s3 + $0x30] sm:$0xff] %vm393, %v345
  %401 = vst.msk [vmem:[%s3 + $0x38] sm:$0xff] %vm393, %v350
  %402 = vst.msk [vmem:[%s3 + $0x40] sm:$0xff] %vm393, %v355
  %403 = vst.msk [vmem:[%s3 + $0x48] sm:$0xff] %vm393, %v360
  %404 = vst.msk [vmem:[%s3 + $0x50] sm:$0xff] %vm393, %v365
  %405 = vst.msk [vmem:[%s3 + $0x58] sm:$0xff] %vm393, %v370
  %406 = vst.msk [vmem:[%s3 + $0x60] sm:$0xff] %vm393, %v375
  %407 = vst.msk [vmem:[%s3 + $0x68] sm:$0xff] %vm393, %v380
  %408 = vst.msk [vmem:[%s3 + $0x70] sm:$0xff] %vm393, %v385
  %409 = vst.msk [vmem:[%s3 + $0x78] sm:$0xff] %vm393, %v390
  // Predicated region
  $region14: #{tpu_custom_call.1} parent=0 // pred_check
    _
  $region15: #{tpu_custom_call.1} parent=0 // pred_check_branch
    %411 = sbr.rel (0) target = $region17
  $region16: #{tpu_custom_call.1} parent=0 // pred_region
    _
  $region17: #{tpu_custom_call.1} parent=0 // pred_fallthru
    _
  // Predicated region
  $region18: #{tpu_custom_call.1} parent=0 // pred_check
    _
  $region19: #{tpu_custom_call.1} parent=0 // pred_check_branch
    %413 = sbr.rel (0) target = $region21
  $region20: #{tpu_custom_call.1} parent=0 // pred_region
    _
  $region21: #{tpu_custom_call.1} parent=0 // pred_fallthru
    _

</llo_original>
